<compile_context>
chip_gen: v5e
topology: v5e:2x2
jax: 0.10.0
libtpu: 0.0.40
codegen_flags: <defaults>
</compile_context>

<pallas_src>
import jax
import jax.numpy as jnp
from jax import lax
from jax.experimental import pallas as pl
from jax.experimental.pallas import tpu as pltpu

LN_EPS = 1e-12  # BertLayerNorm eps


def _round_up(x, m):
    return ((x + m - 1) // m) * m


def _vmem_cap_bytes():
    """~80% of physical VMEM (per-TensorCore), conservatively falling back to a
    v7x-safe 64 MiB if the query is unavailable."""
    phys = 64 * 1024 * 1024
    try:
        info = pltpu.get_tpu_info()
        phys = int(getattr(info, "vmem_capacity_bytes", phys))
    except Exception:
        pass
    return min(int(phys * 0.8), 100 * 1024 * 1024)


def _ln_project_kernel(x_ref, w_ref, gamma_ref, beta_ref, out_ref, ln_ref):
    """x_ref: [tm, H] f32 gathered embeddings (same block for every vocab step);
    w_ref: [H, tn] pre-transposed tied decoder tile (matmul dtype);
    gamma/beta: [1, H] f32; out_ref: [tm, tn] logits tile (f32 or bf16);
    ln_ref: [tm, H] matmul-dtype VMEM scratch persisting across the vocab axis.

    NOTE: the LN-scratch reuse is only valid because the vocab axis is the
    innermost, sequential ("arbitrary") grid axis.  Do not reorder the grid or
    mark axis 1 parallel."""

    # LayerNorm only once per row block (first vocab tile); reused for all j > 0.
    @pl.when(pl.program_id(1) == 0)
    def _():
        x = x_ref[...]                                  # f32 LN math (v5e-friendly)
        mean = jnp.mean(x, axis=-1, keepdims=True)
        xc = x - mean
        var = jnp.mean(xc * xc, axis=-1, keepdims=True)
        inv = lax.rsqrt(var + LN_EPS)
        ln = xc * inv * gamma_ref[...] + beta_ref[...]
        ln_ref[...] = ln.astype(ln_ref.dtype)

    # Tied projection: [tm, H] @ [H, tn] -> [tm, tn], f32 accumulation on the MXU.
    out_ref[...] = jnp.dot(
        ln_ref[...], w_ref[...], preferred_element_type=jnp.float32
    ).astype(out_ref.dtype)


def prepare_decoder_weight(emb_table, *, tn=2048, matmul_dtype=jnp.bfloat16):
    """One-time weight prep (hoist out of the hot path): cast the tied embedding
    table to the matmul dtype FIRST (halves the transpose/pad HBM traffic), then
    transpose to [H, V] and zero-pad the vocab axis to a tn multiple."""
    V, H = emb_table.shape
    tn = min(tn, _round_up(V, 128))
    v_pad = _round_up(V, tn)
    w_t = emb_table.astype(matmul_dtype).T              # [H, V], matmul dtype
    if v_pad != V:
        w_t = jnp.pad(w_t, ((0, 0), (0, v_pad - V)))     # zero cols -> zero logits
    return w_t


def embedding_projection(input_ids, emb_table, gamma, beta, *,
                         tm=1024, tn=2048,
                         matmul_dtype=jnp.bfloat16, out_dtype=jnp.float32,
                         w_t=None):
    """input_ids: [B, S] int32; emb_table: [V, H] f32; gamma/beta: [H] f32.
    w_t: optional pre-computed prepare_decoder_weight() output (recommended: build
    it once at weight-prep time and reuse it across calls).
    Returns logits [B, S, V] in out_dtype."""
    B, S = input_ids.shape
    V, H = emb_table.shape
    N = B * S

    # --- tile sizing -----------------------------------------------------------
    tm = min(tm, _round_up(N, 8))          # sublane multiple (f32 rows)
    # v7x megacore: the row axis is the "parallel" (core-sharded) axis; make sure
    # there are at least two row blocks so both TensorCores get work.
    if _round_up(N, tm) // tm < 2 and tm > 8:
        tm = max(8, _round_up(tm // 2, 8))
    tn = min(tn, _round_up(V, 128))        # lane multiple (vocab)
    n_pad = _round_up(N, tm)
    v_pad = _round_up(V, tn)

    # --- operand prep ----------------------------------------------------------
    # Embedding gather (padding_idx=0 handled by the zeroed row 0 of the table).
    x_emb = jnp.take(emb_table, input_ids.reshape(N), axis=0).astype(jnp.float32)
    if n_pad != N:
        x_emb = jnp.pad(x_emb, ((0, n_pad - N), (0, 0)))  # zero rows: finite LN, sliced off

    # Tied decoder weight: use the cached pre-transposed bf16 copy if supplied,
    # otherwise build it here (still cast-before-transpose).
    if w_t is None or w_t.shape != (H, v_pad) or w_t.dtype != jnp.dtype(matmul_dtype):
        w_t = prepare_decoder_weight(emb_table, tn=tn, matmul_dtype=matmul_dtype)

    gamma2 = gamma.reshape(1, H).astype(jnp.float32)
    beta2 = beta.reshape(1, H).astype(jnp.float32)

    # --- VMEM budget -------------------------------------------------------------
    mm_bytes = jnp.dtype(matmul_dtype).itemsize
    ob_bytes = jnp.dtype(out_dtype).itemsize
    tile_bytes = (2 * tm * H * 4            # x tile (double-buffered)
                  + 2 * H * tn * mm_bytes   # weight tile (double-buffered)
                  + 2 * tm * tn * ob_bytes  # output tile (double-buffered)
                  + tm * H * mm_bytes       # LN scratch
                  + 4 * H * 4)              # gamma / beta
    vmem_limit = int(min(max(tile_bytes + (8 << 20), 32 << 20), _vmem_cap_bytes()))

    out = pl.pallas_call(
        _ln_project_kernel,
        out_shape=jax.ShapeDtypeStruct((n_pad, v_pad), out_dtype),
        grid_spec=pltpu.PrefetchScalarGridSpec(
            num_scalar_prefetch=0,
            grid=(n_pad // tm, v_pad // tn),
            in_specs=[
                pl.BlockSpec((tm, H), lambda i, j: (i, 0)),   # gathered embeddings
                pl.BlockSpec((H, tn), lambda i, j: (0, j)),   # tied decoder weight (pre-T)
                pl.BlockSpec((1, H), lambda i, j: (0, 0)),    # LayerNorm gamma
                pl.BlockSpec((1, H), lambda i, j: (0, 0)),    # LayerNorm beta
            ],
            out_specs=pl.BlockSpec((tm, tn), lambda i, j: (i, j)),
            scratch_shapes=[pltpu.VMEM((tm, H), matmul_dtype)],
        ),
        compiler_params=pltpu.CompilerParams(
            # rows: megacore-parallel; vocab: sequential so the LN scratch written at
            # j == 0 stays valid for the remaining vocab tiles of this row block.
            dimension_semantics=("parallel", "arbitrary"),
            vmem_limit_bytes=vmem_limit),
    )(x_emb, w_t, gamma2, beta2)

    return out[:N, :V].reshape(B, S, V)


def reference(input_ids, emb_table, gamma, beta):
    x = jnp.take(emb_table, input_ids.reshape(-1), axis=0).astype(jnp.float32)
    mean = jnp.mean(x, axis=-1, keepdims=True)
    var = jnp.mean((x - mean) ** 2, axis=-1, keepdims=True)
    ln = (x - mean) / jnp.sqrt(var + LN_EPS) * gamma + beta
    logits = ln @ emb_table.T
    B, S = input_ids.shape
    return logits.reshape(B, S, emb_table.shape[0])


if __name__ == "__main__":
    # Small config consistent with the module: vocab=256, hidden=32, batch=2, seq=8
    VOCAB, HIDDEN, BATCH, SEQ = 256, 32, 2, 8

    key = jax.random.PRNGKey(0)
    k_emb, k_ids = jax.random.split(key)

    # nn.Embedding default init: N(0, 1); padding_idx=0 row zeroed.
    emb_table = jax.random.normal(k_emb, (VOCAB, HIDDEN), dtype=jnp.float32)
    emb_table = emb_table.at[0].set(0.0)

    # BertLayerNorm default init: gamma=1, beta=0.
    gamma = jnp.ones((HIDDEN,), dtype=jnp.float32)
    beta = jnp.zeros((HIDDEN,), dtype=jnp.float32)

    input_ids = jax.random.randint(k_ids, (BATCH, SEQ), 0, VOCAB, dtype=jnp.int32)

    # One-time weight prep (hoisted out of the hot path), then the kernel call.
    w_t = jax.block_until_ready(prepare_decoder_weight(emb_table))
    out = embedding_projection(input_ids, emb_table, gamma, beta, w_t=w_t)
    out = jax.block_until_ready(out)

    ref = reference(input_ids, emb_table, gamma, beta)
    assert out.shape == (BATCH, SEQ, VOCAB), out.shape
    # bf16 matmul operands (f32 accumulation) -> bf16-level tolerance vs the f32 ref.
    max_err = float(jnp.max(jnp.abs(out - ref)))
    assert jnp.allclose(out, ref, atol=1e-1, rtol=5e-2), f"max abs err {max_err}"

    print("KERNEL_OK")
</pallas_src>

<mosaic_0001>
module attributes {stable_mosaic.version = 11 : i64} {
  func.func @_ln_project_kernel(%arg0: i32, %arg1: i32, %arg2: memref<8x32xf32, #tpu.memory_space<vmem>>, %arg3: memref<32x256xbf16, #tpu.memory_space<vmem>>, %arg4: memref<1x32xf32, #tpu.memory_space<vmem>>, %arg5: memref<1x32xf32, #tpu.memory_space<vmem>>, %arg6: memref<8x256xf32, #tpu.memory_space<vmem>>, %arg7: memref<8x32xbf16, #tpu.memory_space<vmem>>) attributes {dimension_semantics = [#tpu.dimension_semantics<parallel>, #tpu.dimension_semantics<arbitrary>], iteration_bounds = array<i64: 2, 1>, scalar_prefetch = 0 : i64, scratch_operands = 1 : i64, tpu.core_type = #tpu.core_type<tc>, window_params = [{transform_indices = @transform_0, window_bounds = array<i64: 8, 32>}, {transform_indices = @transform_1, window_bounds = array<i64: 32, 256>}, {pipeline_mode = #tpu.pipeline_mode<synchronous>, transform_indices = @transform_2, window_bounds = array<i64: 1, 32>}, {pipeline_mode = #tpu.pipeline_mode<synchronous>, transform_indices = @transform_3, window_bounds = array<i64: 1, 32>}, {transform_indices = @transform_4, window_bounds = array<i64: 8, 256>}]} {
    %c0_i32 = arith.constant 0 : i32
    %0 = arith.cmpi eq, %arg1, %c0_i32 : i32
    %1 = arith.extui %0 : i1 to i32
    %c0_i32_0 = arith.constant 0 : i32
    %2 = arith.cmpi ne, %1, %c0_i32_0 : i32
    scf.if %2 {
      %c0_6 = arith.constant 0 : index
      %c0_7 = arith.constant 0 : index
      %7 = vector.load %arg2[%c0_6, %c0_7] : memref<8x32xf32, #tpu.memory_space<vmem>>, vector<8x32xf32>
      %cst_8 = arith.constant dense<0.000000e+00> : vector<8xf32>
      %8 = vector.multi_reduction <add>, %7, %cst_8 [1] : vector<8x32xf32> to vector<8xf32>
      %9 = vector.shape_cast %8 : vector<8xf32> to vector<8x1xf32>
      %cst_9 = arith.constant 3.200000e+01 : f32
      %10 = vector.broadcast %cst_9 : f32 to vector<8x1xf32>
      %11 = arith.divf %9, %10 : vector<8x1xf32>
      %12 = vector.broadcast %11 : vector<8x1xf32> to vector<8x32xf32>
      %13 = arith.subf %7, %12 : vector<8x32xf32>
      %14 = arith.mulf %13, %13 : vector<8x32xf32>
      %cst_10 = arith.constant dense<0.000000e+00> : vector<8xf32>
      %15 = vector.multi_reduction <add>, %14, %cst_10 [1] : vector<8x32xf32> to vector<8xf32>
      %16 = vector.shape_cast %15 : vector<8xf32> to vector<8x1xf32>
      %cst_11 = arith.constant 3.200000e+01 : f32
      %17 = vector.broadcast %cst_11 : f32 to vector<8x1xf32>
      %18 = arith.divf %16, %17 : vector<8x1xf32>
      %cst_12 = arith.constant 9.99999996E-13 : f32
      %19 = vector.broadcast %cst_12 : f32 to vector<8x1xf32>
      %20 = arith.addf %18, %19 : vector<8x1xf32>
      %21 = math.rsqrt %20 : vector<8x1xf32>
      %22 = vector.broadcast %21 : vector<8x1xf32> to vector<8x32xf32>
      %23 = arith.mulf %13, %22 : vector<8x32xf32>
      %c0_13 = arith.constant 0 : index
      %c0_14 = arith.constant 0 : index
      %24 = vector.load %arg4[%c0_13, %c0_14] : memref<1x32xf32, #tpu.memory_space<vmem>>, vector<1x32xf32>
      %25 = vector.broadcast %24 : vector<1x32xf32> to vector<8x32xf32>
      %26 = arith.mulf %23, %25 : vector<8x32xf32>
      %c0_15 = arith.constant 0 : index
      %c0_16 = arith.constant 0 : index
      %27 = vector.load %arg5[%c0_15, %c0_16] : memref<1x32xf32, #tpu.memory_space<vmem>>, vector<1x32xf32>
      %28 = vector.broadcast %27 : vector<1x32xf32> to vector<8x32xf32>
      %29 = arith.addf %26, %28 : vector<8x32xf32>
      %30 = arith.truncf %29 : vector<8x32xf32> to vector<8x32xbf16>
      %c0_17 = arith.constant 0 : index
      %c0_18 = arith.constant 0 : index
      %31 = vector.load %arg7[%c0_17, %c0_18] : memref<8x32xbf16, #tpu.memory_space<vmem>>, vector<8x32xbf16>
      tpu.vector_store %arg7[%c0_17, %c0_18], %30 {strides = array<i32>} : memref<8x32xbf16, #tpu.memory_space<vmem>>, vector<8x32xbf16>,
    } else {
    }
    %c0 = arith.constant 0 : index
    %c0_1 = arith.constant 0 : index
    %3 = vector.load %arg7[%c0, %c0_1] : memref<8x32xbf16, #tpu.memory_space<vmem>>, vector<8x32xbf16>
    %c0_2 = arith.constant 0 : index
    %c0_3 = arith.constant 0 : index
    %4 = vector.load %arg3[%c0_2, %c0_3] : memref<32x256xbf16, #tpu.memory_space<vmem>>, vector<32x256xbf16>
    %cst = arith.constant dense<0.000000e+00> : vector<8x256xf32>
    %5 = tpu.matmul %3, %4, %cst {dimension_numbers = #tpu.dot_dimension_numbers<[1], [0], [0], [1], [0, 0, 1, 1], [], []>} : vector<8x32xbf16>, vector<32x256xbf16>, vector<8x256xf32> -> vector<8x256xf32>
    %c0_4 = arith.constant 0 : index
    %c0_5 = arith.constant 0 : index
    %6 = vector.load %arg6[%c0_4, %c0_5] : memref<8x256xf32, #tpu.memory_space<vmem>>, vector<8x256xf32>
    tpu.vector_store %arg6[%c0_4, %c0_5], %5 {strides = array<i32>} : memref<8x256xf32, #tpu.memory_space<vmem>>, vector<8x256xf32>,
    return
  }
  func.func @transform_0(%arg0: i32, %arg1: i32) -> (i32, i32) {
    %c0_i32 = arith.constant 0 : i32
    %c0_i32_0 = arith.constant 0 : i32
    return %arg0, %c0_i32 : i32, i32
  }
  func.func @transform_1(%arg0: i32, %arg1: i32) -> (i32, i32) {
    %c0_i32 = arith.constant 0 : i32
    %c0_i32_0 = arith.constant 0 : i32
    return %c0_i32, %arg1 : i32, i32
  }
  func.func @transform_2(%arg0: i32, %arg1: i32) -> (i32, i32) {
    %c0_i32 = arith.constant 0 : i32
    %c0_i32_0 = arith.constant 0 : i32
    %c0_i32_1 = arith.constant 0 : i32
    return %c0_i32, %c0_i32_0 : i32, i32
  }
  func.func @transform_3(%arg0: i32, %arg1: i32) -> (i32, i32) {
    %c0_i32 = arith.constant 0 : i32
    %c0_i32_0 = arith.constant 0 : i32
    %c0_i32_1 = arith.constant 0 : i32
    return %c0_i32, %c0_i32_0 : i32, i32
  }
  func.func @transform_4(%arg0: i32, %arg1: i32) -> (i32, i32) {
    %c0_i32 = arith.constant 0 : i32
    return %arg0, %arg1 : i32, i32
  }
}

</mosaic_0001>

<llo_original>
// kernel: tpu_custom_call.1
$region0: #{tpu_custom_call.1}
  #allocation0 [shape = 'u32[]', space=smem, size = 0x4, offset = 0x4, fixed_abs, tag = 'smem constant byte address 0x4 - core index']
  #allocation1 [shape = 'u32[72,128]{1,0:T(1,128)}', space=vmem, size = 0x9000, scoped, tag = 'internal scratch']
  #allocation2 [shape = 'bf16[8,32]{1,0:T(8,128)(2,1)}', space=vmem, size = 0x800, scoped, tag = 'scratch operand']
  %s0 = inlined_call_operand.hbm [shape: f32[16,32], index: 0, kind: input, shape index: {}]
  %s1 = inlined_call_operand.hbm [shape: bf16[32,256], index: 1, kind: input, shape index: {}]
  %s2 = inlined_call_operand.vmem [shape: f32[1,32], index: 2, kind: input, shape index: {}]
  %s3 = inlined_call_operand.vmem [shape: f32[1,32], index: 3, kind: input, shape index: {}]
  %s4 = inlined_call_operand.hbm [shape: f32[16,256], index: 4, kind: output, shape index: {}]
  %s5 = sld [smem:[#allocation0]]
  $region61: #{tpu_custom_call.1} parent=0
    _
  %s7 = ssub.s32 1, %s5
  %s8 = scalar_select 0, %s7, %s5
  $region1: #{tpu_custom_call.1} parent=0
    #allocation3 [shape = 'u8[8192]{0}', space=vmem, size = 0x2000, scoped, tag = 'input window, operand 0']
    #allocation4 [shape = 's32[2]{0}', space=sflag, size = 0x8, scoped, tag = 'scoped memory for tpu_custom_call.1']
    #allocation5 [shape = 's32[2]{0}', space=sflag, size = 0x8, scoped, tag = 'scoped memory for tpu_custom_call.1']
    #allocation6 [shape = 'u8[16384]{0}', space=vmem, size = 0x4000, scoped, tag = 'input window, operand 1, single buffered']
    #allocation7 [shape = 's32[1]{0}', space=sflag, size = 0x4, scoped, tag = 'scoped memory for tpu_custom_call.1']
    #allocation8 [shape = 'u8[16384]{0}', space=vmem, size = 0x4000, scoped, tag = 'output window, operand 0']
    %9 = vsyncpa [#allocation4], 0
    %s10 = scalar_lea.sflag [#allocation4], 1
    %11 = vsyncpa %s10, 0
    %12 = vsyncpa [#allocation7], 0
    %13 = vsyncpa [#allocation5], 0
    %s14 = scalar_lea.sflag [#allocation5], 1
    %15 = vsyncpa %s14, 0
    loop: start=0, step=1, limit=4
    $region2: #{tpu_custom_call.1} parent=1 // loop_pre_header
      _
    $region3: #{tpu_custom_call.1} parent=1 // loop_header
      %s17 = sphi 0, %s21
      %p18 = scmp.ge.s32.totalorder %s17, 4
      %s24 = sphi 0, %s36
      %s25 = sphi 0, %s32
      %s26 = sphi 0, %s24
      %s27 = sphi 0, %s25
      %s28 = sphi 0, %s26
      %s29 = sphi 0, %s27
      %s39 = sphi 0, %s41
      %s42 = sphi 0, %s39
      %s43 = sphi 0, %s42
      %s59 = sphi 0, %s43
      %s65 = sphi 0, %s67
      %s68 = sphi 0, %s65
      %s69 = sphi 0, %s68
      %s85 = sphi 0, %s69
      %s89 = sphi 0, %s89
      %s91 = sphi 0, %s89
      %s92 = sphi 0, %s91
      %s106 = sphi 0, %s92
      %s110 = sphi 0, %s110
      %s112 = sphi 0, %s110
      %s113 = sphi 0, %s112
      %s127 = sphi 0, %s113
      %s135 = sphi 0, %s137
      %s138 = sphi 0, %s135
      %s139 = sphi 0, %s138
      %s155 = sphi 0, %s139
    $region4: #{tpu_custom_call.1} parent=1 // loop_header_branch
      %20 = sbr.rel (%p18) target = $region8
    $region5: #{tpu_custom_call.1} parent=1 // loop_body
      %s22 = ssub.s32 %s17, 1
      %s23 = ssub.s32 %s17, 2
      %s30 = sadd.s32 1, %s25
      %p31 = scmp.ge.s32.totalorder %s30, 1
      %s32 = scalar_select %p31, 0, %s30
      %s33 = sadd.s32 1, %s24
      %s34 = scalar_select %p31, %s33, %s24
      %p35 = scmp.ge.s32.totalorder %s34, 2
      %s36 = scalar_select %p35, 0, %s34
      %s37 = ssub.s32 %s24, %s36
      %p38 = scmp.eq.s32.totalorder %s37, 0
      %s40 = sadd.s32 %s39, 1
      %s41 = scalar_select %p38, %s39, %s40
      %p44 = pneg %p38
      %p45 = scmp.eq.s32.totalorder %s17, 1
      %p46 = por %p44, %p45
      %p47 = scmp.ne.s32.totalorder %s39, %s42
      %p48 = scmp.eq.s32.totalorder %s17, 0
      %p49 = por %p47, %p48
      %p50 = scmp.ne.s32.totalorder %s39, %s42
      %p51 = scmp.eq.s32.totalorder %s22, 1
      %p52 = por %p50, %p51
      %p53 = scmp.ne.s32.totalorder %s42, %s43
      %p54 = scmp.eq.s32.totalorder %s22, 0
      %p55 = por %p53, %p54
      %p56 = scmp.ne.s32.totalorder %s42, %s43
      %p57 = scmp.eq.s32.totalorder %s23, 1
      %p58 = por %p56, %p57
      %p60 = scmp.ne.s32.totalorder %s43, %s59
      %p61 = scmp.eq.s32.totalorder %s23, 0
      %p62 = por %p60, %p61
      %s63 = ssub.s32 %s25, %s32
      %p64 = scmp.eq.s32.totalorder %s63, 0
      %s66 = sadd.s32 %s65, 1
      %s67 = scalar_select %p64, %s65, %s66
      %p70 = pneg %p64
      %p71 = scmp.eq.s32.totalorder %s17, 1
      %p72 = por %p70, %p71
      %p73 = scmp.ne.s32.totalorder %s65, %s68
      %p74 = scmp.eq.s32.totalorder %s17, 0
      %p75 = por %p73, %p74
      %p76 = scmp.ne.s32.totalorder %s65, %s68
      %p77 = scmp.eq.s32.totalorder %s22, 1
      %p78 = por %p76, %p77
      %p79 = scmp.ne.s32.totalorder %s68, %s69
      %p80 = scmp.eq.s32.totalorder %s22, 0
      %p81 = por %p79, %p80
      %p82 = scmp.ne.s32.totalorder %s68, %s69
      %p83 = scmp.eq.s32.totalorder %s23, 1
      %p84 = por %p82, %p83
      %p86 = scmp.ne.s32.totalorder %s69, %s85
      %p87 = scmp.eq.s32.totalorder %s23, 0
      %p88 = por %p86, %p87
      %s90 = sadd.s32 %s89, 1
      %p93 = scmp.eq.s32.totalorder %s17, 1
      %p94 = scmp.ne.s32.totalorder %s89, %s91
      %p95 = scmp.eq.s32.totalorder %s17, 0
      %p96 = por %p94, %p95
      %p97 = scmp.ne.s32.totalorder %s89, %s91
      %p98 = scmp.eq.s32.totalorder %s22, 1
      %p99 = por %p97, %p98
      %p100 = scmp.ne.s32.totalorder %s91, %s92
      %p101 = scmp.eq.s32.totalorder %s22, 0
      %p102 = por %p100, %p101
      %p103 = scmp.ne.s32.totalorder %s91, %s92
      %p104 = scmp.eq.s32.totalorder %s23, 1
      %p105 = por %p103, %p104
      %p107 = scmp.ne.s32.totalorder %s92, %s106
      %p108 = scmp.eq.s32.totalorder %s23, 0
      %p109 = por %p107, %p108
      %s111 = sadd.s32 %s110, 1
      %p114 = scmp.eq.s32.totalorder %s17, 1
      %p115 = scmp.ne.s32.totalorder %s110, %s112
      %p116 = scmp.eq.s32.totalorder %s17, 0
      %p117 = por %p115, %p116
      %p118 = scmp.ne.s32.totalorder %s110, %s112
      %p119 = scmp.eq.s32.totalorder %s22, 1
      %p120 = por %p118, %p119
      %p121 = scmp.ne.s32.totalorder %s112, %s113
      %p122 = scmp.eq.s32.totalorder %s22, 0
      %p123 = por %p121, %p122
      %p124 = scmp.ne.s32.totalorder %s112, %s113
      %p125 = scmp.eq.s32.totalorder %s23, 1
      %p126 = por %p124, %p125
      %p128 = scmp.ne.s32.totalorder %s113, %s127
      %p129 = scmp.eq.s32.totalorder %s23, 0
      %p130 = por %p128, %p129
      %s131 = ssub.s32 %s24, %s36
      %s132 = ssub.s32 %s25, %s32
      %s133 = sor.u32 %s131, %s132
      %p134 = scmp.eq.s32.totalorder %s133, 0
      %s136 = sadd.s32 %s135, 1
      %s137 = scalar_select %p134, %s135, %s136
      %p140 = pneg %p134
      %p141 = scmp.eq.s32.totalorder %s17, 1
      %p142 = por %p140, %p141
      %p143 = scmp.ne.s32.totalorder %s135, %s138
      %p144 = scmp.eq.s32.totalorder %s17, 0
      %p145 = por %p143, %p144
      %p146 = scmp.ne.s32.totalorder %s135, %s138
      %p147 = scmp.eq.s32.totalorder %s22, 1
      %p148 = por %p146, %p147
      %p149 = scmp.ne.s32.totalorder %s138, %s139
      %p150 = scmp.eq.s32.totalorder %s22, 0
      %p151 = por %p149, %p150
      %p152 = scmp.ne.s32.totalorder %s138, %s139
      %p153 = scmp.eq.s32.totalorder %s23, 1
      %p154 = por %p152, %p153
      %p156 = scmp.ne.s32.totalorder %s139, %s155
      %p157 = scmp.eq.s32.totalorder %s23, 0
      %p158 = por %p156, %p157
      %p159 = scmp.le.s32.totalorder 1, %s17
      %p160 = scmp.lt.s32.totalorder %s17, 3
      %p161 = pnand %p159, %p160
      %p162 = pneg %p161
      // Predicated region
      $region9: #{tpu_custom_call.1} parent=5 // pred_check
        _
      $region10: #{tpu_custom_call.1} parent=5 // pred_check_branch
        %164 = sbr.rel (%p161) target = $region12
      $region11: #{tpu_custom_call.1} parent=5 // pred_region
        %s165 = ssub.s32 %s17, 1
        // Predicated region
        $region13: #{tpu_custom_call.1} parent=11 // pred_check
          %p166 = pneg %p81
        $region14: #{tpu_custom_call.1} parent=11 // pred_check_branch
          %168 = sbr.rel (%p166) target = $region16
        $region15: #{tpu_custom_call.1} parent=11 // pred_region
          %s169 = smul.u32 2, %s27
          %171 = vsyncadd [#allocation7], 0
          %s172 = smul.addr %s169, 4
          %s173 = scalar_lea.hbm %s1, %s172
          %s174 = sshll.u32 %s173, 4
          %s175 = int_to_ptr.hbm [resolvable:$true] %s174
          %s176 = sshll.u32 [#allocation6], 4
          %s177 = int_to_ptr.vmem [resolvable:$true] %s176
          %182 = dma.hbm_to_vmem [thread:$0]  %s175, 512, %s177, [#allocation7], 128, 128, 8
        $region16: #{tpu_custom_call.1} parent=11 // pred_fallthru
          _
        // Predicated region
        $region17: #{tpu_custom_call.1} parent=11 // pred_check
          %p183 = pneg %p102
        $region18: #{tpu_custom_call.1} parent=11 // pred_check_branch
          %185 = sbr.rel (%p183) target = $region20
        $region19: #{tpu_custom_call.1} parent=11 // pred_region
          _
        $region20: #{tpu_custom_call.1} parent=11 // pred_fallthru
          _
        // Predicated region
        $region21: #{tpu_custom_call.1} parent=11 // pred_check
          %p186 = pneg %p123
        $region22: #{tpu_custom_call.1} parent=11 // pred_check_branch
          %188 = sbr.rel (%p186) target = $region24
        $region23: #{tpu_custom_call.1} parent=11 // pred_region
          _
        $region24: #{tpu_custom_call.1} parent=11 // pred_fallthru
          _
      $region12: #{tpu_custom_call.1} parent=5 // pred_fallthru
        _
      %p189 = scmp.lt.s32.totalorder %s17, 2
      // Predicated region
      $region25: #{tpu_custom_call.1} parent=5 // pred_check
        %p190 = pneg %p189
      $region26: #{tpu_custom_call.1} parent=5 // pred_check_branch
        %192 = sbr.rel (%p190) target = $region28
      $region27: #{tpu_custom_call.1} parent=5 // pred_region
        // Predicated region
        $region29: #{tpu_custom_call.1} parent=27 // pred_check
          %p193 = pneg %p49
        $region30: #{tpu_custom_call.1} parent=27 // pred_check_branch
          %195 = sbr.rel (%p193) target = $region32
        $region31: #{tpu_custom_call.1} parent=27 // pred_region
          %s196 = sand.u32 %s39, 1
          %s197 = scalar_lea.sflag [#allocation4], %s196
          %s198 = sand.u32 %s39, 1
          %s199 = smul.addr %s198, 8
          %s200 = scalar_lea.vmem [#allocation3], %s199
          %202 = vsyncadd %s197, 0
          %s203 = smul.addr %s24, 8
          %s204 = scalar_lea.hbm %s0, %s203
          %s206 = sshll.u32 %s204, 4
          %s207 = int_to_ptr.hbm [resolvable:$true] %s206
          %s208 = sshll.u32 %s200, 4
          %s209 = int_to_ptr.vmem [resolvable:$true] %s208
          %211 = dma.hbm_to_vmem [thread:$0]  %s207, 128, %s209, %s197
        $region32: #{tpu_custom_call.1} parent=27 // pred_fallthru
          _
      $region28: #{tpu_custom_call.1} parent=5 // pred_fallthru
        _
      %p212 = scmp.le.s32.totalorder 1, %s17
      %p213 = scmp.lt.s32.totalorder %s17, 3
      %p214 = pnand %p212, %p213
      %p215 = pneg %p214
      // Predicated region
      $region33: #{tpu_custom_call.1} parent=5 // pred_check
        _
      $region34: #{tpu_custom_call.1} parent=5 // pred_check_branch
        %217 = sbr.rel (%p214) target = $region36
      $region35: #{tpu_custom_call.1} parent=5 // pred_region
        %s218 = ssub.s32 %s17, 1
        %s219 = sand.u32 %s42, 1
        %s220 = scalar_lea.sflag [#allocation4], %s219
        %s221 = sand.u32 %s42, 1
        %s222 = smul.addr %s221, 8
        %s223 = scalar_lea.vmem [#allocation3], %s222
        // Predicated region
        $region37: #{tpu_custom_call.1} parent=35 // pred_check
          %p224 = pneg %p55
        $region38: #{tpu_custom_call.1} parent=35 // pred_check_branch
          %226 = sbr.rel (%p224) target = $region40
        $region39: #{tpu_custom_call.1} parent=35 // pred_region
          %228 = dma.done %s220, 128
        $region40: #{tpu_custom_call.1} parent=35 // pred_fallthru
          _
        // Predicated region
        $region41: #{tpu_custom_call.1} parent=35 // pred_check
          %p229 = pneg %p81
        $region42: #{tpu_custom_call.1} parent=35 // pred_check_branch
          %231 = sbr.rel (%p229) target = $region44
        $region43: #{tpu_custom_call.1} parent=35 // pred_region
          %233 = dma.done [#allocation7], 512
        $region44: #{tpu_custom_call.1} parent=35 // pred_fallthru
          _
        %s234 = sand.u32 %s42, 1
        %s235 = scalar_lea.sflag [#allocation4], %s234
        %s236 = sand.u32 %s42, 1
        %s237 = smul.addr %s236, 8
        %s238 = scalar_lea.vmem [#allocation3], %s237
        %p239 = pneg %p55
        %p240 = pneg %p52
        %p241 = pneg %p81
        %p242 = pneg %p78
        %p243 = pneg %p102
        %p244 = pneg %p99
        %p245 = pneg %p123
        %p246 = pneg %p120
        %p247 = pneg %p151
        %p248 = pneg %p148
        %s249 = sand.u32 %s138, 1
        %s250 = scalar_lea.sflag [#allocation5], %s249
        %s251 = sand.u32 %s138, 1
        %s252 = smul.addr %s251, 16
        %s253 = scalar_lea.vmem [#allocation8], %s252
        %s254 = smul.u32 2, %s27
        %s255 = smul.u32 2, %s27
        %p257 = scmp.eq.s32.totalorder %s27, 0
        // Predicated region
        $region45: #{tpu_custom_call.1} parent=35 // pred_check
          %p258 = pneg %p257
        $region46: #{tpu_custom_call.1} parent=35 // pred_check_branch
          %260 = sbr.rel (%p258) target = $region48
        $region47: #{tpu_custom_call.1} parent=35 // pred_region
          %v261 = vld [vmem:[%s223] sm:$0xff]
          %vm262 = vcmask 261120
          %v263 = vsel %vm262, %v261, 0.0
          %264 = vadd.xlane.f32.xlu0 %v263
          %v265 = vpop.xlane.xlu0 %264
          %v266 = vrcp.pop 32.0
          %v267 = vmul.f32 32.0, %v266
          %v268 = vsub.f32 1.0, %v267
          %v269 = vmul.f32 %v266, %v268
          %v270 = vadd.f32 %v266, %v269
          %vm271 = vweird.f32 %v266
          %v272 = vsel %vm271, %v266, %v270
          %v273 = vmul.f32 %v265, %v272
          %v274 = vsub.f32 %v261, %v273
          %v275 = vmul.f32 %v274, %v274
          %v276 = vsel %vm262, %v275, 0.0
          %277 = vadd.xlane.f32.xlu0 %v276
          %v278 = vpop.xlane.xlu0 %277
          %v279 = vmul.f32 %v278, %v272
          %v280 = vadd.f32 %v279, 1e-12
          %v281 = vrsqrt.pop %v280
          %v282 = vmul.f32 %v281, %v280
          %v283 = vmul.f32 %v282, %v281
          %v284 = vmul.f32 0.5, %v283
          %v285 = vsub.f32 1.5, %v284
          %v286 = vmul.f32 %v281, %v285
          %vm287 = vweird.f32 %v280
          %vm288 = vweird.f32 %v281
          %vm289 = vmor %vm287, %vm288
          %v290 = vsel %vm289, %v281, %v286
          %v291 = vmul.f32 %v274, %v290
          %v292 = vld [vmem:[%s2] sm:$0x1]
          %v294 = vperm.slane %v292, 0
          %v296 = vmul.f32 %v291, %v294
          %v297 = vld [vmem:[%s3] sm:$0x1]
          %v299 = vperm.slane %v297, 0
          %v301 = vadd.f32 %v296, %v299
          %v302 = vpack.c.bf16 %v301, %v301
          %vm303 = vcmask 257024
          %304 = vst.msk [vmem:[#allocation2] sm:$0xf] %vm303, %v302
        $region48: #{tpu_custom_call.1} parent=35 // pred_fallthru
          _
        %v305 = vld [vmem:[#allocation2] sm:$0xf]
        %v306 = vld [vmem:[#allocation6] sm:$0xff]
        %v307 = vld [vmem:[#allocation6 + $0x8] sm:$0xff]
        %v308 = vld [vmem:[#allocation6 + $0x10] sm:$0xff]
        %v309 = vld [vmem:[#allocation6 + $0x18] sm:$0xff]
        %v314 = vunpack.c.l.b16 %v306
        %v315 = vunpack.c.h.b16 %v306
        %v316 = vunpack.c.l.b16 %v307
        %v317 = vunpack.c.h.b16 %v307
        %v318 = vunpack.c.l.b16 %v308
        %v319 = vunpack.c.h.b16 %v308
        %v320 = vunpack.c.l.b16 %v309
        %v321 = vunpack.c.h.b16 %v309
        %v322 = vpack.c.b16 %v316, %v314
        %v323 = vpack.c.b16 %v317, %v315
        %v324 = vpack.c.b16 %v320, %v318
        %v325 = vpack.c.b16 %v321, %v319
        %vm330 = vcmask 261120
        %v332 = vsel %vm330, %v305, 0
        %334 = vmatpush.bf16.msra.mxu0 0
        %335 = vmatpush.bf16.msra.mxu0 0
        %336 = vmatpush.bf16.msra.mxu0 0
        %337 = vmatpush.bf16.msra.mxu0 0
        %338 = vmatpush.bf16.msra.mxu0 0
        %339 = vmatpush.bf16.msra.mxu0 0
        %340 = vmatpush.bf16.msra.mxu0 %v324
        %341 = vmatpush.bf16.msra.mxu0 %v322
        %342 = vmatmul.bf16.gmra.mxu0 %v332
        %v343 = vpop.f32.mrf.mxu0
        %v344 = vadd.f32 0.0, %v343
        %v345 = vpop.f32.mrf.mxu0
        %346 = vdwg.mxu0
        %347 = vmatpush.bf16.msra.mxu0 0
        %348 = vmatpush.bf16.msra.mxu0 0
        %349 = vmatpush.bf16.msra.mxu0 0
        %350 = vmatpush.bf16.msra.mxu0 0
        %351 = vmatpush.bf16.msra.mxu0 0
        %352 = vmatpush.bf16.msra.mxu0 0
        %353 = vmatpush.bf16.msra.mxu0 %v325
        %354 = vmatpush.bf16.msra.mxu0 %v323
        %355 = vmatmul.bf16.gmra.mxu0 %v332
        %v356 = vpop.f32.mrf.mxu0
        %v357 = vadd.f32 0.0, %v356
        %v358 = vpop.f32.mrf.mxu0
        %359 = vdwg.mxu0
        %360 = vst [vmem:[%s253] sm:$0xff] %v344
        %361 = vst [vmem:[%s253 + $0x8] sm:$0xff] %v357
        %s362 = sand.u32 %s138, 1
        %s363 = scalar_lea.sflag [#allocation5], %s362
        %s364 = sand.u32 %s138, 1
        %s365 = smul.addr %s364, 16
        %s366 = scalar_lea.vmem [#allocation8], %s365
        // Predicated region
        $region49: #{tpu_custom_call.1} parent=35 // pred_check
          %p367 = pneg %p148
        $region50: #{tpu_custom_call.1} parent=35 // pred_check_branch
          %369 = sbr.rel (%p367) target = $region52
        $region51: #{tpu_custom_call.1} parent=35 // pred_region
          %s370 = smul.u32 2, %s27
          %372 = vsyncadd %s363, 0
          %s373 = smul.addr %s26, 2
          %s374 = sadd.s32 %s370, %s373
          %s375 = smul.addr %s374, 8
          %s376 = scalar_lea.hbm %s4, %s375
          %s378 = sshll.u32 %s366, 4
          %s379 = int_to_ptr.vmem [resolvable:$true] %s378
          %s380 = sshll.u32 %s376, 4
          %s381 = int_to_ptr.hbm [resolvable:$true] %s380
          %383 = dma.vmem_to_hbm [thread:$0]  %s379, 256, %s381, %s363
        $region52: #{tpu_custom_call.1} parent=35 // pred_fallthru
          _
      $region36: #{tpu_custom_call.1} parent=5 // pred_fallthru
        _
      %p384 = scmp.le.s32.totalorder 2, %s17
      // Predicated region
      $region53: #{tpu_custom_call.1} parent=5 // pred_check
        %p385 = pneg %p384
      $region54: #{tpu_custom_call.1} parent=5 // pred_check_branch
        %387 = sbr.rel (%p385) target = $region56
      $region55: #{tpu_custom_call.1} parent=5 // pred_region
        %s388 = ssub.s32 %s17, 2
        // Predicated region
        $region57: #{tpu_custom_call.1} parent=55 // pred_check
          %p389 = pneg %p154
        $region58: #{tpu_custom_call.1} parent=55 // pred_check_branch
          %391 = sbr.rel (%p389) target = $region60
        $region59: #{tpu_custom_call.1} parent=55 // pred_region
          %s392 = sand.u32 %s139, 1
          %s393 = scalar_lea.sflag [#allocation5], %s392
          %s394 = sand.u32 %s139, 1
          %s395 = smul.addr %s394, 16
          %s396 = scalar_lea.vmem [#allocation8], %s395
          %398 = dma.done %s393, 256
        $region60: #{tpu_custom_call.1} parent=55 // pred_fallthru
          _
      $region56: #{tpu_custom_call.1} parent=5 // pred_fallthru
        _
    $region6: #{tpu_custom_call.1} parent=1 // loop_footer
      %s21 = sadd.s32 1, %s17
    $region7: #{tpu_custom_call.1} parent=1 // loop_footer_branch
      %16 = sbr.rel target = $region3
    $region8: #{tpu_custom_call.1} parent=1 // loop_exit
      _
    %399 = vsyncpa [#allocation4], 1
    %s400 = scalar_lea.sflag [#allocation4], 1
    %401 = vsyncpa %s400, 1
    %402 = vsyncpa [#allocation7], 1
    %403 = vsyncpa [#allocation5], 1
    %s404 = scalar_lea.sflag [#allocation5], 1
    %405 = vsyncpa %s404, 1

</llo_original>
